<compile_context>
chip_gen: v6e
topology: v6e:2x2x1
jax: 0.10.0
libtpu: 0.0.40
codegen_flags: <defaults>
</compile_context>

<pallas_src>
from functools import reduce

import numpy as np
import jax
import jax.numpy as jnp
from jax.experimental import pallas as pl
from jax.experimental.pallas import tpu as pltpu


def build_entangle_diag(n_qubit: int) -> np.ndarray:
    """Builds diag(op) directly: sign[j] = prod_i (-1 iff bits c_i and v_i of j
    are both 1).  Never materializes the D x D operator."""
    dim = 2 ** n_qubit
    j = np.arange(dim, dtype=np.int64)
    sign = np.ones(dim, dtype=np.float32)
    for i in range(n_qubit):
        c_idx, v_idx = i, (i + 1) % n_qubit
        both = ((j >> c_idx) & 1) & ((j >> v_idx) & 1)
        sign = sign * np.where(both == 1, np.float32(-1.0), np.float32(1.0))
    return sign


def build_entangle_op(n_qubit: int) -> np.ndarray:
    """Full D x D operator exactly as the PyTorch __init__ builds it.
    Used ONLY for the correctness reference check in __main__."""
    dim = 2 ** n_qubit
    gates = []
    for i in range(n_qubit):
        c_idx, v_idx = i, (i + 1) % n_qubit
        g = np.eye(dim, dtype=np.float32)
        for jj in range(dim):
            if (jj // 2 ** c_idx) % 2 == 1 and (jj // 2 ** v_idx) % 2 == 1:
                g[jj, jj] = -1.0
        gates.append(g)
    return reduce(lambda a, b: a * b, gates)  # elementwise product, as in torch


def _entangle_kernel(x_ref, d_ref, re_ref, im_ref):
    # x_ref : (2, tb, D) block — real rows on index 0, imag rows on index 1
    # d_ref : (8, D)     pre-replicated +-1 diagonal (one full f32 vreg)
    # re_ref/im_ref : (tb, D) output blocks (written once, no post-kernel slices)
    d = d_ref[0:1, :]                 # (1, D), broadcast over rows -> pure VPU vmul
    re_ref[...] = x_ref[0] * d
    im_ref[...] = x_ref[1] * d


def entangle_complex(x: jax.Array, diag: jax.Array,
                     *, max_block_rows: int = 1024,
                     vmem_block_budget: int = 8 << 20):
    """x: [2, B, D] (real, imag); diag: [D] +-1 diagonal of `op`.
    Returns (x[0] * diag, x[1] * diag) == (x[0] @ op, x[1] @ op), each [B, D]."""
    two, B, D = x.shape
    assert two == 2 and diag.shape == (D,)
    dt = x.dtype

    # ---- lane-dense packing for small D: fold rows into the lane dimension so
    # stores are full-width (exact: each packed row sees the tiled diagonal).
    pack = 1
    if D < 128 and 128 % D == 0 and B % (128 // D) == 0:
        pack = 128 // D
    Bk, Dk = B // pack, D * pack
    x_k = x.reshape(2, Bk, Dk)
    diag_k = jnp.tile(diag, pack) if pack > 1 else diag

    # Pre-replicate the diagonal across 8 sublanes (one full f32 vreg).
    diag8 = jnp.broadcast_to(diag_k.reshape(1, Dk), (8, Dk)).astype(dt)

    # ---- row tile: largest tile under a conservative per-block VMEM budget.
    # Per block: 2 input rows + 2 output rows of width Dk, double-buffered.
    bytes_per_row = 4 * Dk * dt.itemsize
    tb = int(min(Bk, max_block_rows,
                 max(8, vmem_block_budget // (2 * bytes_per_row))))
    if tb < Bk:
        tb = max(8, (tb // 8) * 8)        # sublane-aligned tile when actually tiling
    grid = (pl.cdiv(Bk, tb),)

    out_re, out_im = pl.pallas_call(
        _entangle_kernel,
        out_shape=(jax.ShapeDtypeStruct((Bk, Dk), dt),
                   jax.ShapeDtypeStruct((Bk, Dk), dt)),
        grid=grid,
        in_specs=[
            pl.BlockSpec((2, tb, Dk), lambda i: (0, i, 0)),
            pl.BlockSpec((8, Dk), lambda i: (0, 0)),
        ],
        out_specs=(
            pl.BlockSpec((tb, Dk), lambda i: (i, 0)),
            pl.BlockSpec((tb, Dk), lambda i: (i, 0)),
        ),
        compiler_params=pltpu.CompilerParams(
            dimension_semantics=("parallel",)),   # shards rows across TCs on v7x
        cost_estimate=pl.CostEstimate(
            flops=2 * Bk * Dk,
            transcendentals=0,
            bytes_accessed=(4 * Bk * Dk + 8 * Dk) * dt.itemsize,
        ),
    )(x_k, diag8)

    if pack > 1:
        out_re = out_re.reshape(B, D)
        out_im = out_im.reshape(B, D)
    return out_re, out_im


if __name__ == "__main__":
    n_qubit = 7           # Hilbert dim D = 2**7 = 128 (lane-aligned)
    dim = 2 ** n_qubit
    batch = 8             # rows per complex part

    diag = jnp.asarray(build_entangle_diag(n_qubit), dtype=jnp.float32)

    key = jax.random.PRNGKey(0)
    # x[0] = real part, x[1] = imaginary part, each [batch, dim]
    x = jax.random.normal(key, (2, batch, dim), dtype=jnp.float32)

    out_re, out_im = entangle_complex(x, diag)
    jax.block_until_ready(out_re)
    jax.block_until_ready(out_im)

    # Reference check against the full-matrix construction from the PyTorch spec.
    op = jnp.asarray(build_entangle_op(n_qubit), dtype=jnp.float32)
    ref_re = x[0] @ op
    ref_im = x[1] @ op
    np.testing.assert_allclose(np.asarray(out_re), np.asarray(ref_re), rtol=1e-6, atol=1e-6)
    np.testing.assert_allclose(np.asarray(out_im), np.asarray(ref_im), rtol=1e-6, atol=1e-6)

    print("KERNEL_OK")
</pallas_src>

<mosaic_0001>
module attributes {stable_mosaic.version = 11 : i64} {
  func.func @_entangle_kernel(%arg0: i32, %arg1: memref<2x8x128xf32, #tpu.memory_space<vmem>>, %arg2: memref<8x128xf32, #tpu.memory_space<vmem>>, %arg3: memref<8x128xf32, #tpu.memory_space<vmem>>, %arg4: memref<8x128xf32, #tpu.memory_space<vmem>>) attributes {dimension_semantics = [#tpu.dimension_semantics<parallel>], iteration_bounds = array<i64: 1>, scalar_prefetch = 0 : i64, scratch_operands = 0 : i64, tpu.core_type = #tpu.core_type<tc>, window_params = [{transform_indices = @transform_0, window_bounds = array<i64: 2, 8, 128>}, {pipeline_mode = #tpu.pipeline_mode<synchronous>, transform_indices = @transform_1, window_bounds = array<i64: 8, 128>}, {transform_indices = @transform_2, window_bounds = array<i64: 8, 128>}, {transform_indices = @transform_3, window_bounds = array<i64: 8, 128>}]} {
    %c0 = arith.constant 0 : index
    %c0_0 = arith.constant 0 : index
    %0 = vector.load %arg2[%c0, %c0_0] : memref<8x128xf32, #tpu.memory_space<vmem>>, vector<1x128xf32>
    %c0_1 = arith.constant 0 : index
    %c0_2 = arith.constant 0 : index
    %c0_3 = arith.constant 0 : index
    %1 = vector.load %arg1[%c0_1, %c0_2, %c0_3] : memref<2x8x128xf32, #tpu.memory_space<vmem>>, vector<1x8x128xf32>
    %2 = vector.shape_cast %1 : vector<1x8x128xf32> to vector<8x128xf32>
    %3 = vector.broadcast %0 : vector<1x128xf32> to vector<8x128xf32>
    %4 = arith.mulf %2, %3 : vector<8x128xf32>
    %c0_4 = arith.constant 0 : index
    %c0_5 = arith.constant 0 : index
    %5 = vector.load %arg3[%c0_4, %c0_5] : memref<8x128xf32, #tpu.memory_space<vmem>>, vector<8x128xf32>
    tpu.vector_store %arg3[%c0_4, %c0_5], %4 {strides = array<i32>} : memref<8x128xf32, #tpu.memory_space<vmem>>, vector<8x128xf32>,
    %c1 = arith.constant 1 : index
    %c0_6 = arith.constant 0 : index
    %c0_7 = arith.constant 0 : index
    %6 = vector.load %arg1[%c1, %c0_6, %c0_7] : memref<2x8x128xf32, #tpu.memory_space<vmem>>, vector<1x8x128xf32>
    %7 = vector.shape_cast %6 : vector<1x8x128xf32> to vector<8x128xf32>
    %8 = vector.broadcast %0 : vector<1x128xf32> to vector<8x128xf32>
    %9 = arith.mulf %7, %8 : vector<8x128xf32>
    %c0_8 = arith.constant 0 : index
    %c0_9 = arith.constant 0 : index
    %10 = vector.load %arg4[%c0_8, %c0_9] : memref<8x128xf32, #tpu.memory_space<vmem>>, vector<8x128xf32>
    tpu.vector_store %arg4[%c0_8, %c0_9], %9 {strides = array<i32>} : memref<8x128xf32, #tpu.memory_space<vmem>>, vector<8x128xf32>,
    return
  }
  func.func @transform_0(%arg0: i32) -> (i32, i32, i32) {
    %c0_i32 = arith.constant 0 : i32
    %c0_i32_0 = arith.constant 0 : i32
    %c0_i32_1 = arith.constant 0 : i32
    return %c0_i32, %arg0, %c0_i32_0 : i32, i32, i32
  }
  func.func @transform_1(%arg0: i32) -> (i32, i32) {
    %c0_i32 = arith.constant 0 : i32
    %c0_i32_0 = arith.constant 0 : i32
    %c0_i32_1 = arith.constant 0 : i32
    return %c0_i32, %c0_i32_0 : i32, i32
  }
  func.func @transform_2(%arg0: i32) -> (i32, i32) {
    %c0_i32 = arith.constant 0 : i32
    %c0_i32_0 = arith.constant 0 : i32
    return %arg0, %c0_i32 : i32, i32
  }
  func.func @transform_3(%arg0: i32) -> (i32, i32) {
    %c0_i32 = arith.constant 0 : i32
    %c0_i32_0 = arith.constant 0 : i32
    return %arg0, %c0_i32 : i32, i32
  }
}

</mosaic_0001>

<llo_original>
// kernel: tpu_custom_call.1
$region0: #{tpu_custom_call.1}
  #allocation0 [shape = 'u32[]', space=smem, size = 0x4, offset = 0x4, fixed_abs, tag = 'smem constant byte address 0x4 - core index']
  #allocation1 [shape = 'u32[144,128]{1,0:T(1,128)}', space=vmem, size = 0x12000, scoped, tag = 'internal scratch']
  %s0 = inlined_call_operand.hbm [shape: f32[2,8,128], index: 0, kind: input, shape index: {}]
  %s1 = inlined_call_operand.hbm [shape: f32[8,128], index: 1, kind: input, shape index: {}]
  %s2 = inlined_call_operand.hbm [shape: f32[8,128], index: 2, kind: output, shape index: {0}]
  %s3 = inlined_call_operand.hbm [shape: f32[8,128], index: 3, kind: output, shape index: {1}]
  %4 = xla_tuple %s2, %s3
  %s5 = sld [smem:[#allocation0]]
  $region34: #{tpu_custom_call.1} parent=0
    _
  %s7 = ssub.s32 1, %s5
  %s8 = scalar_select 0, %s7, %s5
  $region1: #{tpu_custom_call.1} parent=0
    #allocation2 [shape = 'u8[8192]{0}', space=vmem, size = 0x2000, scoped, tag = 'input window, operand 0, single buffered']
    #allocation3 [shape = 's32[1]{0}', space=sflag, size = 0x4, scoped, tag = 'scoped memory for tpu_custom_call.1']
    #allocation4 [shape = 's32[1]{0}', space=sflag, size = 0x4, scoped, tag = 'scoped memory for tpu_custom_call.1']
    #allocation5 [shape = 'u8[4096]{0}', space=vmem, size = 0x1000, scoped, tag = 'input window, operand 1, single buffered']
    #allocation6 [shape = 's32[1]{0}', space=sflag, size = 0x4, scoped, tag = 'scoped memory for tpu_custom_call.1']
    #allocation7 [shape = 'u8[4096]{0}', space=vmem, size = 0x1000, scoped, tag = 'output window, operand 0, single buffered']
    #allocation8 [shape = 'u8[4096]{0}', space=vmem, size = 0x1000, scoped, tag = 'output window, operand 1, single buffered']
    #allocation9 [shape = 's32[1]{0}', space=sflag, size = 0x4, scoped, tag = 'scoped memory for tpu_custom_call.1']
    %9 = vsyncpa [#allocation3], 0
    %10 = vsyncpa [#allocation6], 0
    %11 = vsyncpa [#allocation4], 0
    %12 = vsyncpa [#allocation9], 0
    // Predicated region
    $region2: #{tpu_custom_call.1} parent=1 // pred_check
      _
    $region3: #{tpu_custom_call.1} parent=1 // pred_check_branch
      %14 = sbr.rel (0) target = $region5
    $region4: #{tpu_custom_call.1} parent=1 // pred_region
      %s16 = ssub.s32 256, 256
      %17 = vsyncadd [#allocation3], %s16
      %s18 = sshll.u32 [#allocation2], 4
      %s19 = int_to_ptr.vmem [resolvable:$true] %s18
      %24 = dma.hbm_to_vmem [thread:$0]  %s0, 256, %s19, [#allocation3], 128, 128, 8
    $region5: #{tpu_custom_call.1} parent=1 // pred_fallthru
      _
    // Predicated region
    $region6: #{tpu_custom_call.1} parent=1 // pred_check
      _
    $region7: #{tpu_custom_call.1} parent=1 // pred_check_branch
      %26 = sbr.rel (0) target = $region9
    $region8: #{tpu_custom_call.1} parent=1 // pred_region
      %s28 = ssub.s32 128, 128
      %29 = vsyncadd [#allocation6], %s28
      %s31 = sshll.u32 [#allocation5], 4
      %s32 = int_to_ptr.vmem [resolvable:$true] %s31
      %34 = dma.hbm_to_vmem [thread:$0]  %s1, 128, %s32, [#allocation6]
    $region9: #{tpu_custom_call.1} parent=1 // pred_fallthru
      _
    // Predicated region
    $region10: #{tpu_custom_call.1} parent=1 // pred_check
      _
    $region11: #{tpu_custom_call.1} parent=1 // pred_check_branch
      %36 = sbr.rel (0) target = $region13
    $region12: #{tpu_custom_call.1} parent=1 // pred_region
      %37 = dma.done [#allocation3], 256
    $region13: #{tpu_custom_call.1} parent=1 // pred_fallthru
      _
    // Predicated region
    $region14: #{tpu_custom_call.1} parent=1 // pred_check
      _
    $region15: #{tpu_custom_call.1} parent=1 // pred_check_branch
      %39 = sbr.rel (0) target = $region17
    $region16: #{tpu_custom_call.1} parent=1 // pred_region
      %40 = dma.done [#allocation6], 128
    $region17: #{tpu_custom_call.1} parent=1 // pred_fallthru
      _
    %v41 = vld [vmem:[#allocation5] sm:$0x1]
    %v42 = vld [vmem:[#allocation2] sm:$0xff]
    %v43 = vlaneseq
    %v44 = vshrl.u32 %v43, 7
    %v45 = vsub.s32 0, %v44
    %v46 = vrot.slane %v41, %v45
    %v47 = vmul.f32 %v42, %v46
    %48 = vst [vmem:[#allocation7] sm:$0xff] %v47
    %s49 = scalar_lea.vmem [#allocation2], 8
    %v50 = vld [vmem:[%s49] sm:$0xff]
    %v51 = vmul.f32 %v50, %v46
    %52 = vst [vmem:[#allocation8] sm:$0xff] %v51
    // Predicated region
    $region18: #{tpu_custom_call.1} parent=1 // pred_check
      _
    $region19: #{tpu_custom_call.1} parent=1 // pred_check_branch
      %54 = sbr.rel (0) target = $region21
    $region20: #{tpu_custom_call.1} parent=1 // pred_region
      %s56 = ssub.s32 128, 128
      %57 = vsyncadd [#allocation4], %s56
      %s59 = sshll.u32 [#allocation7], 4
      %s60 = int_to_ptr.vmem [resolvable:$true] %s59
      %62 = dma.vmem_to_hbm [thread:$0]  %s60, 128, %s2, [#allocation4]
    $region21: #{tpu_custom_call.1} parent=1 // pred_fallthru
      _
    // Predicated region
    $region22: #{tpu_custom_call.1} parent=1 // pred_check
      _
    $region23: #{tpu_custom_call.1} parent=1 // pred_check_branch
      %64 = sbr.rel (0) target = $region25
    $region24: #{tpu_custom_call.1} parent=1 // pred_region
      %s66 = ssub.s32 128, 128
      %67 = vsyncadd [#allocation9], %s66
      %s69 = sshll.u32 [#allocation8], 4
      %s70 = int_to_ptr.vmem [resolvable:$true] %s69
      %72 = dma.vmem_to_hbm [thread:$0]  %s70, 128, %s3, [#allocation9]
    $region25: #{tpu_custom_call.1} parent=1 // pred_fallthru
      _
    // Predicated region
    $region26: #{tpu_custom_call.1} parent=1 // pred_check
      _
    $region27: #{tpu_custom_call.1} parent=1 // pred_check_branch
      %74 = sbr.rel (0) target = $region29
    $region28: #{tpu_custom_call.1} parent=1 // pred_region
      %75 = dma.done [#allocation4], 128
    $region29: #{tpu_custom_call.1} parent=1 // pred_fallthru
      _
    // Predicated region
    $region30: #{tpu_custom_call.1} parent=1 // pred_check
      _
    $region31: #{tpu_custom_call.1} parent=1 // pred_check_branch
      %77 = sbr.rel (0) target = $region33
    $region32: #{tpu_custom_call.1} parent=1 // pred_region
      %78 = dma.done [#allocation9], 128
    $region33: #{tpu_custom_call.1} parent=1 // pred_fallthru
      _
    %79 = vsyncpa [#allocation3], 1
    %80 = vsyncpa [#allocation6], 1
    %81 = vsyncpa [#allocation4], 1
    %82 = vsyncpa [#allocation9], 1

</llo_original>
